<compile_context>
chip_gen: v5e
topology: v5e:2x2
jax: 0.10.0
libtpu: 0.0.40
codegen_flags: <defaults>
</compile_context>

<pallas_src>
import math

import jax
import jax.numpy as jnp
from jax.experimental import pallas as pl
from jax.experimental.pallas import tpu as pltpu


def _mlp_kernel(x_ref, w1_ref, b1_ref, w2_ref, b2_ref, o_ref):
    # x_ref : (1, Bp)  lane-dense batch row (Bp = B padded to multiple of 128)
    # w1_ref: (H, 1)   hidden weights (torch layout: (out_features, in_features=1))
    # b1_ref: (H, 1)   hidden bias
    # w2_ref: (H, 1)   predict weights, transposed to a column
    # b2_ref: (1, 1)   SMEM scalar predict bias
    # o_ref : (1, Bp)  lane-dense output row
    x = x_ref[...]                                            # (1, Bp)
    # Hidden layer: outer-product-by-broadcast + bias (VPU), sigmoid (EUP).
    h = jax.nn.sigmoid(w1_ref[...] * x + b1_ref[...])         # (H, Bp)
    # Output layer: weighted sum over hidden units = VPU multiply + XLU sublane reduce.
    out = jnp.sum(h * w2_ref[...], axis=0, keepdims=True)     # (1, Bp)
    o_ref[...] = (out + b2_ref[0, 0]).astype(o_ref.dtype)


def net_forward(x, w1, b1, w2, b2):
    """Forward pass matching torch: sigmoid(x @ w1.T + b1) @ w2.T + b2.

    x : (B, 1)   input column (the linspace samples)
    w1: (H, 1)   torch hidden.weight layout (out_features, in_features)
    b1: (H,)     torch hidden.bias
    w2: (1, H)   torch predict.weight layout
    b2: (1,)     torch predict.bias
    returns (B, 1)
    """
    B, F = x.shape
    H = w1.shape[0]
    O = w2.shape[0]
    # TODO(synk): kernel is specialized to the script's Net(1, n_hidden, 1);
    # general F/O would reintroduce real matmuls.
    assert F == 1 and O == 1, "kernel specialized for n_feature=1, n_output=1"

    # Pad the batch to a multiple of 128 so it is lane-dense (unmasked vst).
    Bp = max(128, ((B + 127) // 128) * 128)
    x_row = x.reshape(1, B)                      # batch on the lane axis
    if Bp != B:
        x_row = jnp.pad(x_row, ((0, 0), (0, Bp - B)))

    w1_col = w1.reshape(H, 1)
    b1_col = b1.reshape(H, 1)
    w2_col = w2.reshape(H, 1)                    # (1, H) -> (H, 1) column
    b2_s = b2.reshape(1, 1)

    vmem = pl.BlockSpec(memory_space=pltpu.MemorySpace.VMEM)
    smem = pl.BlockSpec(memory_space=pltpu.MemorySpace.SMEM)

    out_row = pl.pallas_call(
        _mlp_kernel,
        out_shape=jax.ShapeDtypeStruct((1, Bp), x.dtype),
        in_specs=[vmem, vmem, vmem, vmem, smem],
        out_specs=vmem,
    )(x_row, w1_col, b1_col, w2_col, b2_s)

    return out_row[:, :B].reshape(B, O)


def init_params(key, n_feature, n_hidden, n_output, dtype=jnp.float32):
    """Deterministic init mimicking torch.nn.Linear defaults
    (U[-1/sqrt(fan_in), 1/sqrt(fan_in)]), stored in torch layout."""
    k1, k2, k3, k4 = jax.random.split(key, 4)
    bound1 = 1.0 / math.sqrt(n_feature)
    bound2 = 1.0 / math.sqrt(n_hidden)
    w1 = jax.random.uniform(k1, (n_hidden, n_feature), dtype, -bound1, bound1)
    b1 = jax.random.uniform(k2, (n_hidden,), dtype, -bound1, bound1)
    w2 = jax.random.uniform(k3, (n_output, n_hidden), dtype, -bound2, bound2)
    b2 = jax.random.uniform(k4, (n_output,), dtype, -bound2, bound2)
    return w1, b1, w2, b2


def net_forward_ref(x, w1, b1, w2, b2):
    """Pure-JAX reference with torch Linear semantics."""
    h = jax.nn.sigmoid(x @ w1.T + b1)
    return h @ w2.T + b2


if __name__ == "__main__":
    steps = 64        # batch dimension (the linspace samples)
    n_feature = 1     # Net(1, n_hidden, 1): scalar regression input
    n_hidden = 32
    n_output = 1

    key = jax.random.PRNGKey(0)
    w1, b1, w2, b2 = init_params(key, n_feature, n_hidden, n_output)

    # x = linspace(0, 1, steps) as a (steps, 1) column, like the script.
    x = jnp.linspace(0.0, 1.0, steps, dtype=jnp.float32).reshape(steps, n_feature)

    out = net_forward(x, w1, b1, w2, b2)
    out = jax.block_until_ready(out)

    ref = net_forward_ref(x, w1, b1, w2, b2)
    assert out.shape == (steps, n_output)
    assert jnp.allclose(out, ref, atol=1e-5, rtol=1e-5), "Pallas output mismatch vs reference"

    print("KERNEL_OK")
</pallas_src>

<mosaic_0001>
module attributes {stable_mosaic.version = 11 : i64} {
  func.func @_mlp_kernel(%arg0: memref<1x128xf32, #tpu.memory_space<vmem>>, %arg1: memref<32x1xf32, #tpu.memory_space<vmem>>, %arg2: memref<32x1xf32, #tpu.memory_space<vmem>>, %arg3: memref<32x1xf32, #tpu.memory_space<vmem>>, %arg4: memref<1x1xf32, #tpu.memory_space<smem>>, %arg5: memref<1x128xf32, #tpu.memory_space<vmem>>) attributes {dimension_semantics = [], scalar_prefetch = 0 : i64, scratch_operands = 0 : i64, tpu.core_type = #tpu.core_type<tc>} {
    %c0 = arith.constant 0 : index
    %c0_0 = arith.constant 0 : index
    %0 = vector.load %arg0[%c0, %c0_0] : memref<1x128xf32, #tpu.memory_space<vmem>>, vector<1x128xf32>
    %c0_1 = arith.constant 0 : index
    %c0_2 = arith.constant 0 : index
    %1 = vector.load %arg1[%c0_1, %c0_2] : memref<32x1xf32, #tpu.memory_space<vmem>>, vector<32x1xf32>
    %2 = vector.broadcast %1 : vector<32x1xf32> to vector<32x128xf32>
    %3 = vector.broadcast %0 : vector<1x128xf32> to vector<32x128xf32>
    %4 = arith.mulf %2, %3 : vector<32x128xf32>
    %c0_3 = arith.constant 0 : index
    %c0_4 = arith.constant 0 : index
    %5 = vector.load %arg2[%c0_3, %c0_4] : memref<32x1xf32, #tpu.memory_space<vmem>>, vector<32x1xf32>
    %6 = vector.broadcast %5 : vector<32x1xf32> to vector<32x128xf32>
    %7 = arith.addf %4, %6 : vector<32x128xf32>
    %8 = arith.negf %7 : vector<32x128xf32>
    %9 = math.exp %8 : vector<32x128xf32>
    %cst = arith.constant 1.000000e+00 : f32
    %10 = vector.broadcast %cst : f32 to vector<32x128xf32>
    %11 = arith.addf %10, %9 : vector<32x128xf32>
    %12 = arith.divf %10, %11 : vector<32x128xf32>
    %c0_5 = arith.constant 0 : index
    %c0_6 = arith.constant 0 : index
    %13 = vector.load %arg3[%c0_5, %c0_6] : memref<32x1xf32, #tpu.memory_space<vmem>>, vector<32x1xf32>
    %14 = vector.broadcast %13 : vector<32x1xf32> to vector<32x128xf32>
    %15 = arith.mulf %12, %14 : vector<32x128xf32>
    %cst_7 = arith.constant dense<0.000000e+00> : vector<128xf32>
    %16 = vector.multi_reduction <add>, %15, %cst_7 [0] : vector<32x128xf32> to vector<128xf32>
    %17 = vector.shape_cast %16 : vector<128xf32> to vector<1x128xf32>
    %c0_8 = arith.constant 0 : index
    %c0_9 = arith.constant 0 : index
    %18 = memref.load %arg4[%c0_8, %c0_9] : memref<1x1xf32, #tpu.memory_space<smem>>
    %19 = vector.broadcast %18 : f32 to vector<1x128xf32>
    %20 = arith.addf %17, %19 : vector<1x128xf32>
    %c0_10 = arith.constant 0 : index
    %c0_11 = arith.constant 0 : index
    %21 = vector.load %arg5[%c0_10, %c0_11] : memref<1x128xf32, #tpu.memory_space<vmem>>, vector<1x128xf32>
    tpu.vector_store %arg5[%c0_10, %c0_11], %20 {strides = array<i32>} : memref<1x128xf32, #tpu.memory_space<vmem>>, vector<1x128xf32>,
    return
  }
}

</mosaic_0001>

<llo_original>
// kernel: tpu_custom_call.1
$region0: #{tpu_custom_call.1}
  #allocation0 [shape = 'u32[]', space=smem, size = 0x4, offset = 0x4, fixed_abs, tag = 'smem constant byte address 0x4 - core index']
  #allocation1 [shape = 'u32[72,128]{1,0:T(1,128)}', space=vmem, size = 0x9000, scoped, tag = 'internal scratch']
  #allocation2 [shape = 'f32[1,1]{1,0:T(1,128)S(6)}', space=smem, size = 0x200, scoped, tag = 'scoped memory for tpu_custom_call.1']
  %s0 = inlined_call_operand.vmem [shape: f32[1,128], index: 0, kind: input, shape index: {}]
  %s1 = inlined_call_operand.vmem [shape: f32[32,1], index: 1, kind: input, shape index: {}]
  %s2 = inlined_call_operand.vmem [shape: f32[32,1], index: 2, kind: input, shape index: {}]
  %s3 = inlined_call_operand.vmem [shape: f32[32,1], index: 3, kind: input, shape index: {}]
  %s4 = inlined_call_operand.<no memory space> [shape: f32[1,1], index: 4, kind: input, shape index: {}]
  %s5 = inlined_call_operand.hbm [shape: f32[1,128], index: 5, kind: output, shape index: {}]
  %s6 = sld [smem:[#allocation0]]
  $region30: #{tpu_custom_call.1} parent=0
    _
  %s8 = ssub.s32 1, %s6
  %s9 = scalar_select 0, %s8, %s6
  %10 = sst [smem:[#allocation2]] %s4
  $region1: #{tpu_custom_call.1} parent=0
    #allocation3 [shape = 'u8[512]{0}', space=vmem, size = 0x400, scoped, tag = 'output window, operand 0, single buffered']
    #allocation4 [shape = 's32[1]{0}', space=sflag, size = 0x4, scoped, tag = 'scoped memory for tpu_custom_call.1']
    %11 = vsyncpa [#allocation4], 0
    // Predicated region
    $region2: #{tpu_custom_call.1} parent=1 // pred_check
      _
    $region3: #{tpu_custom_call.1} parent=1 // pred_check_branch
      %13 = sbr.rel (0) target = $region5
    $region4: #{tpu_custom_call.1} parent=1 // pred_region
      _
    $region5: #{tpu_custom_call.1} parent=1 // pred_fallthru
      _
    // Predicated region
    $region6: #{tpu_custom_call.1} parent=1 // pred_check
      _
    $region7: #{tpu_custom_call.1} parent=1 // pred_check_branch
      %15 = sbr.rel (0) target = $region9
    $region8: #{tpu_custom_call.1} parent=1 // pred_region
      _
    $region9: #{tpu_custom_call.1} parent=1 // pred_fallthru
      _
    // Predicated region
    $region10: #{tpu_custom_call.1} parent=1 // pred_check
      _
    $region11: #{tpu_custom_call.1} parent=1 // pred_check_branch
      %17 = sbr.rel (0) target = $region13
    $region12: #{tpu_custom_call.1} parent=1 // pred_region
      _
    $region13: #{tpu_custom_call.1} parent=1 // pred_fallthru
      _
    // Predicated region
    $region14: #{tpu_custom_call.1} parent=1 // pred_check
      _
    $region15: #{tpu_custom_call.1} parent=1 // pred_check_branch
      %19 = sbr.rel (0) target = $region17
    $region16: #{tpu_custom_call.1} parent=1 // pred_region
      _
    $region17: #{tpu_custom_call.1} parent=1 // pred_fallthru
      _
    // Predicated region
    $region18: #{tpu_custom_call.1} parent=1 // pred_check
      _
    $region19: #{tpu_custom_call.1} parent=1 // pred_check_branch
      %21 = sbr.rel (0) target = $region21
    $region20: #{tpu_custom_call.1} parent=1 // pred_region
      _
    $region21: #{tpu_custom_call.1} parent=1 // pred_fallthru
      _
    %v22 = vld [vmem:[%s0] sm:$0x1]
    %v23 = vld [vmem:[%s1] sm:$0xff]
    %v24 = vld [vmem:[%s1 + $0x8] sm:$0xff]
    %v25 = vld [vmem:[%s1 + $0x10] sm:$0xff]
    %v26 = vld [vmem:[%s1 + $0x18] sm:$0xff]
    %28 = vset.pattern.permute.xlu0 0
    %29 = vperm.xlu0 %28, %v23
    %v30 = vpop.permute.xlu0 %29
    %33 = vset.pattern.permute.xlu0 0
    %34 = vperm.xlu0 %33, %v24
    %v35 = vpop.permute.xlu0 %34
    %38 = vset.pattern.permute.xlu0 0
    %39 = vperm.xlu0 %38, %v25
    %v40 = vpop.permute.xlu0 %39
    %43 = vset.pattern.permute.xlu0 0
    %44 = vperm.xlu0 %43, %v26
    %v45 = vpop.permute.xlu0 %44
    %v48 = vperm.slane %v22, 0
    %v50 = vmul.f32 %v30, %v48
    %v51 = vmul.f32 %v35, %v48
    %v52 = vmul.f32 %v40, %v48
    %v53 = vmul.f32 %v45, %v48
    %v54 = vld [vmem:[%s2] sm:$0xff]
    %v55 = vld [vmem:[%s2 + $0x8] sm:$0xff]
    %v56 = vld [vmem:[%s2 + $0x10] sm:$0xff]
    %v57 = vld [vmem:[%s2 + $0x18] sm:$0xff]
    %59 = vset.pattern.permute.xlu0 0
    %60 = vperm.xlu0 %59, %v54
    %v61 = vpop.permute.xlu0 %60
    %64 = vset.pattern.permute.xlu0 0
    %65 = vperm.xlu0 %64, %v55
    %v66 = vpop.permute.xlu0 %65
    %69 = vset.pattern.permute.xlu0 0
    %70 = vperm.xlu0 %69, %v56
    %v71 = vpop.permute.xlu0 %70
    %74 = vset.pattern.permute.xlu0 0
    %75 = vperm.xlu0 %74, %v57
    %v76 = vpop.permute.xlu0 %75
    %v78 = vadd.f32 %v50, %v61
    %v79 = vadd.f32 %v51, %v66
    %v80 = vadd.f32 %v52, %v71
    %v81 = vadd.f32 %v53, %v76
    %v82 = vxor.u32 %v78, 2147483648
    %v83 = vxor.u32 %v79, 2147483648
    %v84 = vxor.u32 %v80, 2147483648
    %v85 = vxor.u32 %v81, 2147483648
    %v86 = vmul.f32 %v82, 1.442695
    %v87 = vpow.pop %v86
    %v88 = vmul.f32 %v83, 1.442695
    %v89 = vpow.pop %v88
    %v90 = vmul.f32 %v84, 1.442695
    %v91 = vpow.pop %v90
    %v92 = vmul.f32 %v85, 1.442695
    %v93 = vpow.pop %v92
    %v94 = vadd.f32 %v87, 1.0
    %v95 = vadd.f32 %v89, 1.0
    %v96 = vadd.f32 %v91, 1.0
    %v97 = vadd.f32 %v93, 1.0
    %v98 = vrcp.pop %v94
    %v99 = vmul.f32 %v94, %v98
    %v100 = vsub.f32 1.0, %v99
    %v101 = vmul.f32 %v98, %v100
    %v102 = vadd.f32 %v98, %v101
    %vm103 = vweird.f32 %v94
    %vm104 = vweird.f32 %v98
    %vm105 = vmor %vm103, %vm104
    %v106 = vsel %vm105, %v98, %v102
    %v107 = vand.u32 2147483647, %v94
    %vm108 = vcmp.eq.f32.partialorder %v107, 8.507059e+37
    %v109 = vand.u32 %v94, 2147483648
    %v110 = vor.u32 1.1754944e-38, %v109
    %v111 = vsel %vm108, %v110, %v106
    %v112 = vmul.f32 1.0, %v111
    %v113 = vrcp.pop %v95
    %v114 = vmul.f32 %v95, %v113
    %v115 = vsub.f32 1.0, %v114
    %v116 = vmul.f32 %v113, %v115
    %v117 = vadd.f32 %v113, %v116
    %vm118 = vweird.f32 %v95
    %vm119 = vweird.f32 %v113
    %vm120 = vmor %vm118, %vm119
    %v121 = vsel %vm120, %v113, %v117
    %v122 = vand.u32 2147483647, %v95
    %vm123 = vcmp.eq.f32.partialorder %v122, 8.507059e+37
    %v124 = vand.u32 %v95, 2147483648
    %v125 = vor.u32 1.1754944e-38, %v124
    %v126 = vsel %vm123, %v125, %v121
    %v127 = vmul.f32 1.0, %v126
    %v128 = vrcp.pop %v96
    %v129 = vmul.f32 %v96, %v128
    %v130 = vsub.f32 1.0, %v129
    %v131 = vmul.f32 %v128, %v130
    %v132 = vadd.f32 %v128, %v131
    %vm133 = vweird.f32 %v96
    %vm134 = vweird.f32 %v128
    %vm135 = vmor %vm133, %vm134
    %v136 = vsel %vm135, %v128, %v132
    %v137 = vand.u32 2147483647, %v96
    %vm138 = vcmp.eq.f32.partialorder %v137, 8.507059e+37
    %v139 = vand.u32 %v96, 2147483648
    %v140 = vor.u32 1.1754944e-38, %v139
    %v141 = vsel %vm138, %v140, %v136
    %v142 = vmul.f32 1.0, %v141
    %v143 = vrcp.pop %v97
    %v144 = vmul.f32 %v97, %v143
    %v145 = vsub.f32 1.0, %v144
    %v146 = vmul.f32 %v143, %v145
    %v147 = vadd.f32 %v143, %v146
    %vm148 = vweird.f32 %v97
    %vm149 = vweird.f32 %v143
    %vm150 = vmor %vm148, %vm149
    %v151 = vsel %vm150, %v143, %v147
    %v152 = vand.u32 2147483647, %v97
    %vm153 = vcmp.eq.f32.partialorder %v152, 8.507059e+37
    %v154 = vand.u32 %v97, 2147483648
    %v155 = vor.u32 1.1754944e-38, %v154
    %v156 = vsel %vm153, %v155, %v151
    %v157 = vmul.f32 1.0, %v156
    %v158 = vld [vmem:[%s3] sm:$0xff]
    %v159 = vld [vmem:[%s3 + $0x8] sm:$0xff]
    %v160 = vld [vmem:[%s3 + $0x10] sm:$0xff]
    %v161 = vld [vmem:[%s3 + $0x18] sm:$0xff]
    %163 = vset.pattern.permute.xlu0 0
    %164 = vperm.xlu0 %163, %v158
    %v165 = vpop.permute.xlu0 %164
    %168 = vset.pattern.permute.xlu0 0
    %169 = vperm.xlu0 %168, %v159
    %v170 = vpop.permute.xlu0 %169
    %173 = vset.pattern.permute.xlu0 0
    %174 = vperm.xlu0 %173, %v160
    %v175 = vpop.permute.xlu0 %174
    %178 = vset.pattern.permute.xlu0 0
    %179 = vperm.xlu0 %178, %v161
    %v180 = vpop.permute.xlu0 %179
    %v182 = vmul.f32 %v112, %v165
    %v183 = vmul.f32 %v127, %v170
    %v184 = vmul.f32 %v142, %v175
    %v185 = vmul.f32 %v157, %v180
    %v186 = vadd.f32 %v182, %v183
    %v187 = vadd.f32 %v186, %v184
    %v188 = vadd.f32 %v187, %v185
    %v189 = vrot.slane %v188, 4
    %v190 = vadd.f32 %v188, %v189
    %v191 = vrot.slane %v190, 2
    %v192 = vadd.f32 %v190, %v191
    %v193 = vrot.slane %v192, 1
    %v194 = vadd.f32 %v192, %v193
    %s195 = sld [smem:[#allocation2]]
    %v196 = vstv %s195
    %v197 = vadd.f32 %v194, %v196
    %198 = vst [vmem:[#allocation3] sm:$0x1] %v197
    // Predicated region
    $region22: #{tpu_custom_call.1} parent=1 // pred_check
      _
    $region23: #{tpu_custom_call.1} parent=1 // pred_check_branch
      %200 = sbr.rel (0) target = $region25
    $region24: #{tpu_custom_call.1} parent=1 // pred_region
      %202 = vsyncadd [#allocation4], 0
      %s204 = sshll.u32 [#allocation3], 4
      %s205 = int_to_ptr.vmem [resolvable:$true] %s204
      %s206 = sshll.u32 %s5, 4
      %s207 = int_to_ptr.hbm [resolvable:$true] %s206
      %209 = dma.vmem_to_hbm [thread:$0]  %s205, 16, %s207, [#allocation4]
    $region25: #{tpu_custom_call.1} parent=1 // pred_fallthru
      _
    // Predicated region
    $region26: #{tpu_custom_call.1} parent=1 // pred_check
      _
    $region27: #{tpu_custom_call.1} parent=1 // pred_check_branch
      %211 = sbr.rel (0) target = $region29
    $region28: #{tpu_custom_call.1} parent=1 // pred_region
      %213 = dma.done [#allocation4], 16
    $region29: #{tpu_custom_call.1} parent=1 // pred_fallthru
      _
    %214 = vsyncpa [#allocation4], 1

</llo_original>
